<compile_context>
chip_gen: v6e
topology: v6e:2x2x1
jax: 0.10.0
libtpu: 0.0.40
codegen_flags: <defaults>
</compile_context>

<pallas_src>
import functools

import jax
import jax.numpy as jnp
from jax import lax
from jax.experimental import pallas as pl
from jax.experimental.pallas import tpu as pltpu

# ----------------------------- config ---------------------------------------
ASSOCIATION_SPACE_DIM = 32   # config.model.associationSpace_dim
AFFINE = True                # config.model.layerNormBlock.affine
LN_EPS = 1e-5                # torch.nn.LayerNorm default eps
BATCH = 2
N_ACTIVES = 12
N_INACTIVES = 12
N_MEMORY = 16                # rows of memory_TrainMols (context molecules)


def _round_up(x, m):
    return ((x + m - 1) // m) * m


# ----------------------------- kernel ---------------------------------------
def layernorm_kernel(x_ref, g_ref, b_ref, o_ref, *, inv_d, eps):
    """Row-wise LayerNorm over the last (lane) axis with per-row affine params."""
    x = x_ref[...]                                      # (TR, D)
    mu = jnp.sum(x, axis=-1, keepdims=True) * inv_d     # mean via sum * (1/D)
    xc = x - mu
    var = jnp.sum(xc * xc, axis=-1, keepdims=True) * inv_d   # biased variance
    inv_std = lax.rsqrt(var + eps)                      # EUP rsqrt, no VALU divide
    o_ref[...] = xc * inv_std * g_ref[...] + b_ref[...]


# ----------------------------- wrapper ---------------------------------------
def layer_normalizing_block(query_embedding, support_actives_embedding,
                            support_inactives_embedding, memory_train_mols,
                            params, *, eps=LN_EPS):
    """Forward of LayerNormalizingBlockSepp (layerNormBlock.usage == True)."""
    D = query_embedding.shape[-1]

    tensors = [('query', query_embedding), ('actives', support_actives_embedding)]
    if support_inactives_embedding is not None:
        tensors.append(('inactives', support_inactives_embedding))
    tensors.append(('memory', memory_train_mols))

    flat = [t.reshape(-1, D) for _, t in tensors]
    rows = [f.shape[0] for f in flat]

    # One lane-dense slab + pre-broadcast per-row affine params (hoisted out of
    # the kernel; JAX does not CSE broadcast_in_dim inside kernel bodies).
    x = jnp.concatenate(flat, axis=0)                                   # (R, D)
    g = jnp.concatenate([jnp.broadcast_to(params[n]['gamma'][None, :], (r, D))
                         for (n, _), r in zip(tensors, rows)], axis=0)
    b = jnp.concatenate([jnp.broadcast_to(params[n]['beta'][None, :], (r, D))
                         for (n, _), r in zip(tensors, rows)], axis=0)

    R = x.shape[0]
    n_blocks = 2 if R >= 16 else 1        # 2 "parallel" steps -> both v7x TCs
    tr = _round_up(pl.cdiv(R, n_blocks), 8)   # sublane-aligned row block
    rp = tr * n_blocks
    pad = rp - R
    if pad:
        x = jnp.pad(x, ((0, pad), (0, 0)))
        g = jnp.pad(g, ((0, pad), (0, 0)))
        b = jnp.pad(b, ((0, pad), (0, 0)))

    spec = pl.BlockSpec((tr, D), lambda i: (i, 0))
    out = pl.pallas_call(
        functools.partial(layernorm_kernel, inv_d=1.0 / D, eps=eps),
        out_shape=jax.ShapeDtypeStruct((rp, D), x.dtype),
        grid=(n_blocks,),
        in_specs=[spec, spec, spec],
        out_specs=spec,
        compiler_params=pltpu.CompilerParams(dimension_semantics=("parallel",)),
    )(x, g, b)

    # Split the slab back into the four original tensors (static slices).
    outs = []
    off = 0
    for (_, t), r in zip(tensors, rows):
        outs.append(out[off:off + r].reshape(t.shape))
        off += r

    if support_inactives_embedding is None:
        q_o, a_o, m_o = outs
        return q_o, a_o, None, m_o
    q_o, a_o, i_o, m_o = outs
    return q_o, a_o, i_o, m_o


# ----------------------------- params ----------------------------------------
def init_params(key, dim, affine=AFFINE):
    """Four LayerNorm parameter sets (torch init is gamma=1, beta=0; perturbed
    here so the four norms are actually distinct in the test)."""
    names = ('query', 'actives', 'inactives', 'memory')
    params = {}
    if affine:
        keys = jax.random.split(key, 2 * len(names))
        for i, n in enumerate(names):
            params[n] = {
                'gamma': 1.0 + 0.1 * jax.random.normal(keys[2 * i], (dim,), jnp.float32),
                'beta': 0.1 * jax.random.normal(keys[2 * i + 1], (dim,), jnp.float32),
            }
    else:
        for n in names:
            params[n] = {'gamma': jnp.ones((dim,), jnp.float32),
                         'beta': jnp.zeros((dim,), jnp.float32)}
    return params


# ------------------------- pure-JAX reference --------------------------------
def _ln_ref(x, gamma, beta, eps=LN_EPS):
    mu = jnp.mean(x, axis=-1, keepdims=True)
    var = jnp.mean(jnp.square(x - mu), axis=-1, keepdims=True)
    return (x - mu) * lax.rsqrt(var + eps) * gamma + beta


def reference(query, sup_act, sup_inact, memory, params, eps=LN_EPS):
    q = _ln_ref(query, params['query']['gamma'], params['query']['beta'], eps)
    a = _ln_ref(sup_act, params['actives']['gamma'], params['actives']['beta'], eps)
    i = (_ln_ref(sup_inact, params['inactives']['gamma'], params['inactives']['beta'], eps)
         if sup_inact is not None else None)
    m = _ln_ref(memory, params['memory']['gamma'], params['memory']['beta'], eps)
    return q, a, i, m


# ----------------------------- main -------------------------------------------
if __name__ == "__main__":
    D = ASSOCIATION_SPACE_DIM
    key = jax.random.PRNGKey(0)
    k_q, k_a, k_i, k_m, k_p = jax.random.split(key, 5)

    query = jax.random.normal(k_q, (BATCH, 1, D), jnp.float32)
    support_actives = jax.random.normal(k_a, (BATCH, N_ACTIVES, D), jnp.float32)
    support_inactives = jax.random.normal(k_i, (BATCH, N_INACTIVES, D), jnp.float32)
    memory_train_mols = jax.random.normal(k_m, (1, N_MEMORY, D), jnp.float32)
    params = init_params(k_p, D)

    fwd = jax.jit(layer_normalizing_block)
    q_o, a_o, i_o, m_o = fwd(query, support_actives, support_inactives,
                             memory_train_mols, params)
    jax.block_until_ready((q_o, a_o, i_o, m_o))

    rq, ra, ri, rm = reference(query, support_actives, support_inactives,
                               memory_train_mols, params)

    assert q_o.shape == query.shape
    assert a_o.shape == support_actives.shape
    assert i_o.shape == support_inactives.shape
    assert m_o.shape == memory_train_mols.shape
    # rtol accommodates a potential approximate-EUP rsqrt lowering; outputs are
    # O(1), so any semantic error would be orders of magnitude larger.
    assert jnp.allclose(q_o, rq, atol=1e-4, rtol=1e-3)
    assert jnp.allclose(a_o, ra, atol=1e-4, rtol=1e-3)
    assert jnp.allclose(i_o, ri, atol=1e-4, rtol=1e-3)
    assert jnp.allclose(m_o, rm, atol=1e-4, rtol=1e-3)

    print("KERNEL_OK")
</pallas_src>

<mosaic_0001>
module attributes {stable_mosaic.version = 11 : i64} {
  func.func @layernorm_kernel(%arg0: i32, %arg1: memref<40x32xf32, #tpu.memory_space<vmem>>, %arg2: memref<40x32xf32, #tpu.memory_space<vmem>>, %arg3: memref<40x32xf32, #tpu.memory_space<vmem>>, %arg4: memref<40x32xf32, #tpu.memory_space<vmem>>) attributes {dimension_semantics = [#tpu.dimension_semantics<parallel>], iteration_bounds = array<i64: 2>, scalar_prefetch = 0 : i64, scratch_operands = 0 : i64, tpu.core_type = #tpu.core_type<tc>, window_params = [{transform_indices = @transform_0, window_bounds = array<i64: 40, 32>}, {transform_indices = @transform_1, window_bounds = array<i64: 40, 32>}, {transform_indices = @transform_2, window_bounds = array<i64: 40, 32>}, {transform_indices = @transform_3, window_bounds = array<i64: 40, 32>}]} {
    %c0 = arith.constant 0 : index
    %c0_0 = arith.constant 0 : index
    %0 = vector.load %arg1[%c0, %c0_0] : memref<40x32xf32, #tpu.memory_space<vmem>>, vector<40x32xf32>
    %cst = arith.constant dense<0.000000e+00> : vector<40xf32>
    %1 = vector.multi_reduction <add>, %0, %cst [1] : vector<40x32xf32> to vector<40xf32>
    %2 = vector.shape_cast %1 : vector<40xf32> to vector<40x1xf32>
    %cst_1 = arith.constant 3.125000e-02 : f32
    %3 = vector.broadcast %cst_1 : f32 to vector<40x1xf32>
    %4 = arith.mulf %2, %3 : vector<40x1xf32>
    %5 = vector.broadcast %4 : vector<40x1xf32> to vector<40x32xf32>
    %6 = arith.subf %0, %5 : vector<40x32xf32>
    %7 = arith.mulf %6, %6 : vector<40x32xf32>
    %cst_2 = arith.constant dense<0.000000e+00> : vector<40xf32>
    %8 = vector.multi_reduction <add>, %7, %cst_2 [1] : vector<40x32xf32> to vector<40xf32>
    %9 = vector.shape_cast %8 : vector<40xf32> to vector<40x1xf32>
    %cst_3 = arith.constant 3.125000e-02 : f32
    %10 = vector.broadcast %cst_3 : f32 to vector<40x1xf32>
    %11 = arith.mulf %9, %10 : vector<40x1xf32>
    %cst_4 = arith.constant 9.99999974E-6 : f32
    %12 = vector.broadcast %cst_4 : f32 to vector<40x1xf32>
    %13 = arith.addf %11, %12 : vector<40x1xf32>
    %14 = math.rsqrt %13 : vector<40x1xf32>
    %15 = vector.broadcast %14 : vector<40x1xf32> to vector<40x32xf32>
    %16 = arith.mulf %6, %15 : vector<40x32xf32>
    %c0_5 = arith.constant 0 : index
    %c0_6 = arith.constant 0 : index
    %17 = vector.load %arg2[%c0_5, %c0_6] : memref<40x32xf32, #tpu.memory_space<vmem>>, vector<40x32xf32>
    %18 = arith.mulf %16, %17 : vector<40x32xf32>
    %c0_7 = arith.constant 0 : index
    %c0_8 = arith.constant 0 : index
    %19 = vector.load %arg3[%c0_7, %c0_8] : memref<40x32xf32, #tpu.memory_space<vmem>>, vector<40x32xf32>
    %20 = arith.addf %18, %19 : vector<40x32xf32>
    %c0_9 = arith.constant 0 : index
    %c0_10 = arith.constant 0 : index
    %21 = vector.load %arg4[%c0_9, %c0_10] : memref<40x32xf32, #tpu.memory_space<vmem>>, vector<40x32xf32>
    tpu.vector_store %arg4[%c0_9, %c0_10], %20 {strides = array<i32>} : memref<40x32xf32, #tpu.memory_space<vmem>>, vector<40x32xf32>,
    return
  }
  func.func @transform_0(%arg0: i32) -> (i32, i32) {
    %c0_i32 = arith.constant 0 : i32
    %c0_i32_0 = arith.constant 0 : i32
    return %arg0, %c0_i32 : i32, i32
  }
  func.func @transform_1(%arg0: i32) -> (i32, i32) {
    %c0_i32 = arith.constant 0 : i32
    %c0_i32_0 = arith.constant 0 : i32
    return %arg0, %c0_i32 : i32, i32
  }
  func.func @transform_2(%arg0: i32) -> (i32, i32) {
    %c0_i32 = arith.constant 0 : i32
    %c0_i32_0 = arith.constant 0 : i32
    return %arg0, %c0_i32 : i32, i32
  }
  func.func @transform_3(%arg0: i32) -> (i32, i32) {
    %c0_i32 = arith.constant 0 : i32
    %c0_i32_0 = arith.constant 0 : i32
    return %arg0, %c0_i32 : i32, i32
  }
}

</mosaic_0001>

<llo_original>
// kernel: layer_normalizing_block.1
$region0: #{layer_normalizing_block.1}
  #allocation0 [shape = 'u32[]', space=smem, size = 0x4, offset = 0x4, fixed_abs, tag = 'smem constant byte address 0x4 - core index']
  #allocation1 [shape = 'u32[144,128]{1,0:T(1,128)}', space=vmem, size = 0x12000, scoped, tag = 'internal scratch']
  %s0 = inlined_call_operand.vmem [shape: f32[80,32], index: 0, kind: input, shape index: {}]
  %s1 = inlined_call_operand.vmem [shape: f32[80,32], index: 1, kind: input, shape index: {}]
  %s2 = inlined_call_operand.vmem [shape: f32[80,32], index: 2, kind: input, shape index: {}]
  %s3 = inlined_call_operand.vmem [shape: f32[80,32], index: 3, kind: output, shape index: {}]
  %s4 = sld [smem:[#allocation0]]
  $region45: #{layer_normalizing_block.1} parent=0
    _
  %s6 = ssub.s32 1, %s4
  %s7 = scalar_select 0, %s6, %s4
  loop: start=0, step=1, limit=4
  $region2: #{layer_normalizing_block.1} parent=0 // loop_pre_header
    _
  $region3: #{layer_normalizing_block.1} parent=0 // loop_header
    %s9 = sphi 0, %s13
    %p10 = scmp.ge.s32.totalorder %s9, 4
    %s19 = sphi 0, %s21
    %s22 = sphi 0, %s19
    %s23 = sphi 0, %s22
    %s39 = sphi 0, %s23
    %s45 = sphi 0, %s47
    %s48 = sphi 0, %s45
    %s49 = sphi 0, %s48
    %s65 = sphi 0, %s49
    %s71 = sphi 0, %s73
    %s74 = sphi 0, %s71
    %s75 = sphi 0, %s74
    %s91 = sphi 0, %s75
    %s97 = sphi 0, %s99
    %s100 = sphi 0, %s97
    %s101 = sphi 0, %s100
    %s117 = sphi 0, %s101
  $region4: #{layer_normalizing_block.1} parent=0 // loop_header_branch
    %12 = sbr.rel (%p10) target = $region8
  $region5: #{layer_normalizing_block.1} parent=0 // loop_body
    %s14 = ssub.s32 %s9, 1
    %s15 = ssub.s32 %s9, 2
    %s16 = sadd.s32 %s9, 1
    %s17 = ssub.s32 %s9, %s16
    %p18 = scmp.eq.s32.totalorder %s17, 0
    %s20 = sadd.s32 %s19, 1
    %s21 = scalar_select %p18, %s19, %s20
    %p24 = pneg %p18
    %p25 = scmp.eq.s32.totalorder %s9, 1
    %p26 = por %p24, %p25
    %p27 = scmp.ne.s32.totalorder %s19, %s22
    %p28 = scmp.eq.s32.totalorder %s9, 0
    %p29 = por %p27, %p28
    %p30 = scmp.ne.s32.totalorder %s19, %s22
    %p31 = scmp.eq.s32.totalorder %s14, 1
    %p32 = por %p30, %p31
    %p33 = scmp.ne.s32.totalorder %s22, %s23
    %p34 = scmp.eq.s32.totalorder %s14, 0
    %p35 = por %p33, %p34
    %p36 = scmp.ne.s32.totalorder %s22, %s23
    %p37 = scmp.eq.s32.totalorder %s15, 1
    %p38 = por %p36, %p37
    %p40 = scmp.ne.s32.totalorder %s23, %s39
    %p41 = scmp.eq.s32.totalorder %s15, 0
    %p42 = por %p40, %p41
    %s43 = ssub.s32 %s9, %s16
    %p44 = scmp.eq.s32.totalorder %s43, 0
    %s46 = sadd.s32 %s45, 1
    %s47 = scalar_select %p44, %s45, %s46
    %p50 = pneg %p44
    %p51 = scmp.eq.s32.totalorder %s9, 1
    %p52 = por %p50, %p51
    %p53 = scmp.ne.s32.totalorder %s45, %s48
    %p54 = scmp.eq.s32.totalorder %s9, 0
    %p55 = por %p53, %p54
    %p56 = scmp.ne.s32.totalorder %s45, %s48
    %p57 = scmp.eq.s32.totalorder %s14, 1
    %p58 = por %p56, %p57
    %p59 = scmp.ne.s32.totalorder %s48, %s49
    %p60 = scmp.eq.s32.totalorder %s14, 0
    %p61 = por %p59, %p60
    %p62 = scmp.ne.s32.totalorder %s48, %s49
    %p63 = scmp.eq.s32.totalorder %s15, 1
    %p64 = por %p62, %p63
    %p66 = scmp.ne.s32.totalorder %s49, %s65
    %p67 = scmp.eq.s32.totalorder %s15, 0
    %p68 = por %p66, %p67
    %s69 = ssub.s32 %s9, %s16
    %p70 = scmp.eq.s32.totalorder %s69, 0
    %s72 = sadd.s32 %s71, 1
    %s73 = scalar_select %p70, %s71, %s72
    %p76 = pneg %p70
    %p77 = scmp.eq.s32.totalorder %s9, 1
    %p78 = por %p76, %p77
    %p79 = scmp.ne.s32.totalorder %s71, %s74
    %p80 = scmp.eq.s32.totalorder %s9, 0
    %p81 = por %p79, %p80
    %p82 = scmp.ne.s32.totalorder %s71, %s74
    %p83 = scmp.eq.s32.totalorder %s14, 1
    %p84 = por %p82, %p83
    %p85 = scmp.ne.s32.totalorder %s74, %s75
    %p86 = scmp.eq.s32.totalorder %s14, 0
    %p87 = por %p85, %p86
    %p88 = scmp.ne.s32.totalorder %s74, %s75
    %p89 = scmp.eq.s32.totalorder %s15, 1
    %p90 = por %p88, %p89
    %p92 = scmp.ne.s32.totalorder %s75, %s91
    %p93 = scmp.eq.s32.totalorder %s15, 0
    %p94 = por %p92, %p93
    %s95 = ssub.s32 %s9, %s16
    %p96 = scmp.eq.s32.totalorder %s95, 0
    %s98 = sadd.s32 %s97, 1
    %s99 = scalar_select %p96, %s97, %s98
    %p102 = pneg %p96
    %p103 = scmp.eq.s32.totalorder %s9, 1
    %p104 = por %p102, %p103
    %p105 = scmp.ne.s32.totalorder %s97, %s100
    %p106 = scmp.eq.s32.totalorder %s9, 0
    %p107 = por %p105, %p106
    %p108 = scmp.ne.s32.totalorder %s97, %s100
    %p109 = scmp.eq.s32.totalorder %s14, 1
    %p110 = por %p108, %p109
    %p111 = scmp.ne.s32.totalorder %s100, %s101
    %p112 = scmp.eq.s32.totalorder %s14, 0
    %p113 = por %p111, %p112
    %p114 = scmp.ne.s32.totalorder %s100, %s101
    %p115 = scmp.eq.s32.totalorder %s15, 1
    %p116 = por %p114, %p115
    %p118 = scmp.ne.s32.totalorder %s101, %s117
    %p119 = scmp.eq.s32.totalorder %s15, 0
    %p120 = por %p118, %p119
    %p121 = scmp.le.s32.totalorder 1, %s9
    %p122 = scmp.lt.s32.totalorder %s9, 3
    %p123 = pnand %p121, %p122
    %p124 = pneg %p123
    // Predicated region
    $region9: #{layer_normalizing_block.1} parent=5 // pred_check
      _
    $region10: #{layer_normalizing_block.1} parent=5 // pred_check_branch
      %126 = sbr.rel (%p123) target = $region12
    $region11: #{layer_normalizing_block.1} parent=5 // pred_region
      %s127 = ssub.s32 %s9, 1
    $region12: #{layer_normalizing_block.1} parent=5 // pred_fallthru
      _
    %p128 = scmp.lt.s32.totalorder %s9, 2
    // Predicated region
    $region13: #{layer_normalizing_block.1} parent=5 // pred_check
      %p129 = pneg %p128
    $region14: #{layer_normalizing_block.1} parent=5 // pred_check_branch
      %131 = sbr.rel (%p129) target = $region16
    $region15: #{layer_normalizing_block.1} parent=5 // pred_region
      // Predicated region
      $region17: #{layer_normalizing_block.1} parent=15 // pred_check
        %p132 = pneg %p29
      $region18: #{layer_normalizing_block.1} parent=15 // pred_check_branch
        %134 = sbr.rel (%p132) target = $region20
      $region19: #{layer_normalizing_block.1} parent=15 // pred_region
        %s135 = smul.u32 5, %s9
        %p136 = scmp.lt.s32.totalorder %s135, 9
        %s137 = scalar_select %p136, %s135, 9
        %s138 = smul.addr %s137, 8
        %s139 = scalar_lea.vmem %s0, %s138
        %s140 = smul.u32 5, %s9
      $region20: #{layer_normalizing_block.1} parent=15 // pred_fallthru
        _
      // Predicated region
      $region21: #{layer_normalizing_block.1} parent=15 // pred_check
        %p141 = pneg %p55
      $region22: #{layer_normalizing_block.1} parent=15 // pred_check_branch
        %143 = sbr.rel (%p141) target = $region24
      $region23: #{layer_normalizing_block.1} parent=15 // pred_region
        %s144 = smul.u32 5, %s9
        %p145 = scmp.lt.s32.totalorder %s144, 9
        %s146 = scalar_select %p145, %s144, 9
        %s147 = smul.addr %s146, 8
        %s148 = scalar_lea.vmem %s1, %s147
        %s149 = smul.u32 5, %s9
      $region24: #{layer_normalizing_block.1} parent=15 // pred_fallthru
        _
      // Predicated region
      $region25: #{layer_normalizing_block.1} parent=15 // pred_check
        %p150 = pneg %p81
      $region26: #{layer_normalizing_block.1} parent=15 // pred_check_branch
        %152 = sbr.rel (%p150) target = $region28
      $region27: #{layer_normalizing_block.1} parent=15 // pred_region
        %s153 = smul.u32 5, %s9
        %p154 = scmp.lt.s32.totalorder %s153, 9
        %s155 = scalar_select %p154, %s153, 9
        %s156 = smul.addr %s155, 8
        %s157 = scalar_lea.vmem %s2, %s156
        %s158 = smul.u32 5, %s9
      $region28: #{layer_normalizing_block.1} parent=15 // pred_fallthru
        _
    $region16: #{layer_normalizing_block.1} parent=5 // pred_fallthru
      _
    %p159 = scmp.le.s32.totalorder 1, %s9
    %p160 = scmp.lt.s32.totalorder %s9, 3
    %p161 = pnand %p159, %p160
    %p162 = pneg %p161
    // Predicated region
    $region29: #{layer_normalizing_block.1} parent=5 // pred_check
      _
    $region30: #{layer_normalizing_block.1} parent=5 // pred_check_branch
      %164 = sbr.rel (%p161) target = $region32
    $region31: #{layer_normalizing_block.1} parent=5 // pred_region
      %s165 = ssub.s32 %s9, 1
      %s166 = smul.u32 5, %s14
      %p167 = scmp.lt.s32.totalorder %s166, 9
      %s168 = scalar_select %p167, %s166, 9
      %s169 = smul.addr %s168, 8
      %s170 = scalar_lea.vmem %s0, %s169
      %p171 = pneg %p35
      %p172 = pneg %p32
      %s173 = smul.u32 5, %s14
      %p174 = scmp.lt.s32.totalorder %s173, 9
      %s175 = scalar_select %p174, %s173, 9
      %s176 = smul.addr %s175, 8
      %s177 = scalar_lea.vmem %s1, %s176
      %p178 = pneg %p61
      %p179 = pneg %p58
      %s180 = smul.u32 5, %s14
      %p181 = scmp.lt.s32.totalorder %s180, 9
      %s182 = scalar_select %p181, %s180, 9
      %s183 = smul.addr %s182, 8
      %s184 = scalar_lea.vmem %s2, %s183
      %p185 = pneg %p87
      %p186 = pneg %p84
      %p187 = pneg %p113
      %p188 = pneg %p110
      %s189 = smul.u32 5, %s14
      %p190 = scmp.lt.s32.totalorder %s189, 9
      %s191 = scalar_select %p190, %s189, 9
      %s192 = smul.addr %s191, 8
      %s193 = scalar_lea.vmem %s3, %s192
      %s194 = smul.u32 5, %s14
      %p195 = scmp.lt.s32.totalorder %s194, 9
      %s196 = scalar_select %p195, %s194, 9
      %s197 = smul.addr %s196, 8
      %s198 = scalar_lea.vmem %s0, %s197
      %s199 = smul.u32 5, %s14
      %s200 = smul.u32 5, %s14
      %p201 = scmp.lt.s32.totalorder %s200, 9
      %s202 = scalar_select %p201, %s200, 9
      %s203 = smul.addr %s202, 8
      %s204 = scalar_lea.vmem %s1, %s203
      %s205 = smul.u32 5, %s14
      %s206 = smul.u32 5, %s14
      %p207 = scmp.lt.s32.totalorder %s206, 9
      %s208 = scalar_select %p207, %s206, 9
      %s209 = smul.addr %s208, 8
      %s210 = scalar_lea.vmem %s2, %s209
      %s211 = smul.u32 5, %s14
      %s212 = smul.u32 5, %s14
      %p213 = scmp.lt.s32.totalorder %s212, 9
      %s214 = scalar_select %p213, %s212, 9
      %s215 = smul.addr %s214, 8
      %s216 = scalar_lea.vmem %s3, %s215
      %s217 = smul.u32 5, %s14
      %v218 = vld [vmem:[%s198] sm:$0xff]
      %v219 = vld [vmem:[%s198 + $0x8] sm:$0xff]
      %v220 = vld [vmem:[%s198 + $0x10] sm:$0xff]
      %v221 = vld [vmem:[%s198 + $0x18] sm:$0xff]
      %v222 = vld [vmem:[%s198 + $0x20] sm:$0xff]
      %vm223 = vcmask 261120
      %v224 = vsel %vm223, %v218, 0.0
      %225 = vadd.xlane.f32.xlu0 %v224
      %v226 = vpop.xlane.xlu0 %225
      %v227 = vsel %vm223, %v219, 0.0
      %228 = vadd.xlane.f32.xlu0 %v227
      %v229 = vpop.xlane.xlu0 %228
      %v230 = vsel %vm223, %v220, 0.0
      %231 = vadd.xlane.f32.xlu0 %v230
      %v232 = vpop.xlane.xlu0 %231
      %v233 = vsel %vm223, %v221, 0.0
      %234 = vadd.xlane.f32.xlu0 %v233
      %v235 = vpop.xlane.xlu0 %234
      %v236 = vsel %vm223, %v222, 0.0
      %237 = vadd.xlane.f32.xlu0 %v236
      %v238 = vpop.xlane.xlu0 %237
      %v239 = vmul.f32 %v226, 0.03125
      %v240 = vmul.f32 %v229, 0.03125
      %v241 = vmul.f32 %v232, 0.03125
      %v242 = vmul.f32 %v235, 0.03125
      %v243 = vmul.f32 %v238, 0.03125
      %v244 = vsub.f32 %v218, %v239
      %v245 = vsub.f32 %v219, %v240
      %v246 = vsub.f32 %v220, %v241
      %v247 = vsub.f32 %v221, %v242
      %v248 = vsub.f32 %v222, %v243
      %v249 = vmul.f32 %v244, %v244
      %v250 = vmul.f32 %v245, %v245
      %v251 = vmul.f32 %v246, %v246
      %v252 = vmul.f32 %v247, %v247
      %v253 = vmul.f32 %v248, %v248
      %v254 = vsel %vm223, %v249, 0.0
      %255 = vadd.xlane.f32.xlu0 %v254
      %v256 = vpop.xlane.xlu0 %255
      %v257 = vsel %vm223, %v250, 0.0
      %258 = vadd.xlane.f32.xlu0 %v257
      %v259 = vpop.xlane.xlu0 %258
      %v260 = vsel %vm223, %v251, 0.0
      %261 = vadd.xlane.f32.xlu0 %v260
      %v262 = vpop.xlane.xlu0 %261
      %v263 = vsel %vm223, %v252, 0.0
      %264 = vadd.xlane.f32.xlu0 %v263
      %v265 = vpop.xlane.xlu0 %264
      %v266 = vsel %vm223, %v253, 0.0
      %267 = vadd.xlane.f32.xlu0 %v266
      %v268 = vpop.xlane.xlu0 %267
      %v269 = vmul.f32 %v256, 0.03125
      %v270 = vmul.f32 %v259, 0.03125
      %v271 = vmul.f32 %v262, 0.03125
      %v272 = vmul.f32 %v265, 0.03125
      %v273 = vmul.f32 %v268, 0.03125
      %v274 = vadd.f32 %v269, 1e-05
      %v275 = vadd.f32 %v270, 1e-05
      %v276 = vadd.f32 %v271, 1e-05
      %v277 = vadd.f32 %v272, 1e-05
      %v278 = vadd.f32 %v273, 1e-05
      %v279 = vrsqrt.pop %v274
      %v280 = vrsqrt.pop %v275
      %v281 = vrsqrt.pop %v276
      %v282 = vrsqrt.pop %v277
      %v283 = vrsqrt.pop %v278
      %v284 = vmul.f32 %v244, %v279
      %v285 = vmul.f32 %v245, %v280
      %v286 = vmul.f32 %v246, %v281
      %v287 = vmul.f32 %v247, %v282
      %v288 = vmul.f32 %v248, %v283
      %v289 = vld [vmem:[%s204] sm:$0xff]
      %v290 = vld [vmem:[%s204 + $0x8] sm:$0xff]
      %v291 = vld [vmem:[%s204 + $0x10] sm:$0xff]
      %v292 = vld [vmem:[%s204 + $0x18] sm:$0xff]
      %v293 = vld [vmem:[%s204 + $0x20] sm:$0xff]
      %v294 = vmul.f32 %v284, %v289
      %v295 = vmul.f32 %v285, %v290
      %v296 = vmul.f32 %v286, %v291
      %v297 = vmul.f32 %v287, %v292
      %v298 = vmul.f32 %v288, %v293
      %v299 = vld [vmem:[%s210] sm:$0xff]
      %v300 = vld [vmem:[%s210 + $0x8] sm:$0xff]
      %v301 = vld [vmem:[%s210 + $0x10] sm:$0xff]
      %v302 = vld [vmem:[%s210 + $0x18] sm:$0xff]
      %v303 = vld [vmem:[%s210 + $0x20] sm:$0xff]
      %v304 = vadd.f32 %v294, %v299
      %v305 = vadd.f32 %v295, %v300
      %v306 = vadd.f32 %v296, %v301
      %v307 = vadd.f32 %v297, %v302
      %v308 = vadd.f32 %v298, %v303
      %309 = vst.msk [vmem:[%s216] sm:$0xff] %vm223, %v304
      %310 = vst.msk [vmem:[%s216 + $0x8] sm:$0xff] %vm223, %v305
      %311 = vst.msk [vmem:[%s216 + $0x10] sm:$0xff] %vm223, %v306
      %312 = vst.msk [vmem:[%s216 + $0x18] sm:$0xff] %vm223, %v307
      %313 = vst.msk [vmem:[%s216 + $0x20] sm:$0xff] %vm223, %v308
      %s314 = smul.u32 5, %s14
      %p315 = scmp.lt.s32.totalorder %s314, 9
      %s316 = scalar_select %p315, %s314, 9
      %s317 = smul.addr %s316, 8
      %s318 = scalar_lea.vmem %s3, %s317
      // Predicated region
      $region33: #{layer_normalizing_block.1} parent=31 // pred_check
        %p319 = pneg %p110
      $region34: #{layer_normalizing_block.1} parent=31 // pred_check_branch
        %321 = sbr.rel (%p319) target = $region36
      $region35: #{layer_normalizing_block.1} parent=31 // pred_region
        %s322 = smul.u32 5, %s14
      $region36: #{layer_normalizing_block.1} parent=31 // pred_fallthru
        _
    $region32: #{layer_normalizing_block.1} parent=5 // pred_fallthru
      _
    %p323 = scmp.le.s32.totalorder 2, %s9
    // Predicated region
    $region37: #{layer_normalizing_block.1} parent=5 // pred_check
      %p324 = pneg %p323
    $region38: #{layer_normalizing_block.1} parent=5 // pred_check_branch
      %326 = sbr.rel (%p324) target = $region40
    $region39: #{layer_normalizing_block.1} parent=5 // pred_region
      %s327 = ssub.s32 %s9, 2
      // Predicated region
      $region41: #{layer_normalizing_block.1} parent=39 // pred_check
        %p328 = pneg %p116
      $region42: #{layer_normalizing_block.1} parent=39 // pred_check_branch
        %330 = sbr.rel (%p328) target = $region44
      $region43: #{layer_normalizing_block.1} parent=39 // pred_region
        %s331 = smul.u32 5, %s15
        %p332 = scmp.lt.s32.totalorder %s331, 9
        %s333 = scalar_select %p332, %s331, 9
        %s334 = smul.addr %s333, 8
        %s335 = scalar_lea.vmem %s3, %s334
      $region44: #{layer_normalizing_block.1} parent=39 // pred_fallthru
        _
    $region40: #{layer_normalizing_block.1} parent=5 // pred_fallthru
      _
  $region6: #{layer_normalizing_block.1} parent=0 // loop_footer
    %s13 = sadd.s32 1, %s9
  $region7: #{layer_normalizing_block.1} parent=0 // loop_footer_branch
    %8 = sbr.rel target = $region3
  $region8: #{layer_normalizing_block.1} parent=0 // loop_exit
    _

</llo_original>
